<compile_context>
chip_gen: v6e
topology: v6e:2x2x1
jax: 0.10.0
libtpu: 0.0.40
codegen_flags: <defaults>
</compile_context>

<pallas_src>
import functools
import numpy as np
import jax
import jax.numpy as jnp
from jax.experimental import pallas as pl
from jax.experimental.pallas import tpu as pltpu


def _choose_row_tile(m, max_tile=512):
    """Largest row tile <= max_tile that evenly divides m (full block for small m)."""
    if m <= max_tile:
        return m
    for t in (512, 384, 256, 128, 64, 32, 16, 8):
        if m % t == 0:
            return t
    return m


# ---------------------------------------------------------------------------
# Kernel 1: fused Q/K/V projection.  x (tm, F) @ W_qkv (F, 3F) -> (tm, 3F)
# ---------------------------------------------------------------------------
def qkv_kernel(x_ref, w_ref, o_ref):
    o_ref[...] = jnp.dot(
        x_ref[...], w_ref[...],
        preferred_element_type=jnp.float32).astype(o_ref.dtype)


def qkv_projection(x_bf16, w_qkv_bf16):
    M, F = x_bf16.shape
    F3 = w_qkv_bf16.shape[1]
    tm = _choose_row_tile(M)
    return pl.pallas_call(
        qkv_kernel,
        grid=(M // tm,),
        in_specs=[pl.BlockSpec((tm, F), lambda i: (i, 0)),
                  pl.BlockSpec((F, F3), lambda i: (0, 0))],   # weight resident
        out_specs=pl.BlockSpec((tm, F3), lambda i: (i, 0)),
        out_shape=jax.ShapeDtypeStruct((M, F3), jnp.bfloat16),
        compiler_params=pltpu.CompilerParams(
            dimension_semantics=("parallel",)),
    )(x_bf16, w_qkv_bf16)


# ---------------------------------------------------------------------------
# Kernel 2: attention core.  One batch element (all heads) per grid step.
#   energy = q @ k^T (1/scale already folded into Wq); mask==0 -> -1e30;
#   softmax in f32; out = attn @ v; store as lane-dense (S, F) slab.
# ---------------------------------------------------------------------------
def attn_core_kernel(q_ref, k_ref, v_ref, m_ref, o_ref, acc_ref,
                     *, num_head, size_per_head):
    q = q_ref[...]          # (H, S, D) bf16
    k = k_ref[...]          # (H, S, D) bf16
    v = v_ref[...]          # (H, S, D) bf16
    m = m_ref[...]          # (S, S)    f32

    # (H, S, S) f32 accumulation on the MXU; k consumed via transposed contraction
    # (no materialized k^T copy).
    energy = jnp.einsum('hqd,hkd->hqk', q, k,
                        preferred_element_type=jnp.float32)
    energy = jnp.where(m[None, :, :] == 0, -1e30, energy)

    e_max = jnp.max(energy, axis=-1, keepdims=True)
    p = jnp.exp(energy - e_max)
    denom = jnp.sum(p, axis=-1, keepdims=True)
    attn = p * pl.reciprocal(denom, approx=True)              # EUP vrcp

    # (H, S, D) f32
    o = jnp.einsum('hqk,hkd->hqd', attn.astype(v.dtype), v,
                   preferred_element_type=jnp.float32)

    # Head-interleave into (S, F) = torch permute(0,2,1,3).view(B,-1,F) layout,
    # then one full-tile lane-dense store.
    for h in range(num_head):
        acc_ref[:, h * size_per_head:(h + 1) * size_per_head] = o[h]
    o_ref[...] = acc_ref[...].astype(o_ref.dtype)


def attention_core(q, k, v, mask, num_head, size_per_head):
    B, H, S, D = q.shape
    F = H * D
    qkv_spec = pl.BlockSpec((None, H, S, D), lambda b: (b, 0, 0, 0))
    mask_spec = pl.BlockSpec((None, S, S), lambda b: (b, 0, 0))
    out_spec = pl.BlockSpec((None, S, F), lambda b: (b, 0, 0))
    return pl.pallas_call(
        functools.partial(attn_core_kernel, num_head=num_head,
                          size_per_head=size_per_head),
        grid=(B,),
        in_specs=[qkv_spec, qkv_spec, qkv_spec, mask_spec],
        out_specs=out_spec,
        out_shape=jax.ShapeDtypeStruct((B, S, F), jnp.bfloat16),
        scratch_shapes=[pltpu.VMEM((S, F), jnp.float32)],
        compiler_params=pltpu.CompilerParams(
            dimension_semantics=("parallel",)),
    )(q, k, v, mask)


# ---------------------------------------------------------------------------
# Kernel 3: output projection + residual + LayerNorm (dropout = identity).
# ---------------------------------------------------------------------------
def out_kernel(o_ref, w_ref, res_ref, g_ref, b_ref, y_ref, *, eps):
    y = jnp.dot(o_ref[...], w_ref[...],
                preferred_element_type=jnp.float32)            # bf16 MXU, f32 acc
    y = y + res_ref[...]                                       # residual in f32
    mean = jnp.mean(y, axis=-1, keepdims=True)
    var = jnp.mean(jnp.square(y - mean), axis=-1, keepdims=True)
    yn = (y - mean) * jax.lax.rsqrt(var + eps)
    y_ref[...] = yn * g_ref[...] + b_ref[...]


def out_projection(o_bf16, wfc_bf16, res_f32, gamma, beta, eps=1e-5):
    M, F = o_bf16.shape
    tm = _choose_row_tile(M)
    return pl.pallas_call(
        functools.partial(out_kernel, eps=eps),
        grid=(M // tm,),
        in_specs=[pl.BlockSpec((tm, F), lambda i: (i, 0)),
                  pl.BlockSpec((F, F), lambda i: (0, 0)),      # weight resident
                  pl.BlockSpec((tm, F), lambda i: (i, 0)),
                  pl.BlockSpec((1, F), lambda i: (0, 0)),
                  pl.BlockSpec((1, F), lambda i: (0, 0))],
        out_specs=pl.BlockSpec((tm, F), lambda i: (i, 0)),
        out_shape=jax.ShapeDtypeStruct((M, F), jnp.float32),
        compiler_params=pltpu.CompilerParams(
            dimension_semantics=("parallel",)),
    )(o_bf16, wfc_bf16, res_f32, gamma, beta)


# ---------------------------------------------------------------------------
# Full forward pass (glue + kernels)
# ---------------------------------------------------------------------------
def attention_forward(params, x, attn_mask, lengths, num_head):
    # `lengths` is unused by the reference forward pass (kept for signature parity).
    del lengths
    B, S, F = x.shape
    D = F // num_head
    scale = float(np.sqrt(D))
    M = B * S

    res_flat = x.reshape(M, F)                       # f32 residual path
    x_bf16 = res_flat.astype(jnp.bfloat16)           # bf16 MXU operand

    # Fused QKV weight (in, 3*out), with 1/scale folded into Wq.
    w_qkv = jnp.concatenate(
        [params["wq"].T / scale, params["wk"].T, params["wv"].T],
        axis=1).astype(jnp.bfloat16)

    qkv = qkv_projection(x_bf16, w_qkv)              # (M, 3F) bf16
    q_flat = qkv[:, :F]
    k_flat = qkv[:, F:2 * F]
    v_flat = qkv[:, 2 * F:]

    # Quirky reshape exactly as in the PyTorch module:
    # (B, S, F) viewed as (B, num_head, -1, size_per_head) on the flat buffer.
    q = q_flat.reshape(B, num_head, S, D)
    k = k_flat.reshape(B, num_head, S, D)
    v = v_flat.reshape(B, num_head, S, D)

    o = attention_core(q, k, v, attn_mask, num_head, D)   # (B, S, F) bf16, already permuted layout
    o_flat = o.reshape(M, F)

    y_flat = out_projection(
        o_flat, params["wfc"].T.astype(jnp.bfloat16), res_flat,
        params["gamma"].reshape(1, F), params["beta"].reshape(1, F))
    return y_flat.reshape(B, S, F)


# ---------------------------------------------------------------------------
# Pure-JAX f32 reference (mirrors the PyTorch forward line-by-line).
# ---------------------------------------------------------------------------
def attention_ref(params, x, attn_mask, num_head):
    B, S, F = x.shape
    D = F // num_head
    res = x
    q = x @ params["wq"].T
    k = x @ params["wk"].T
    v = x @ params["wv"].T
    q = q.reshape(B, num_head, -1, D)
    k = k.reshape(B, num_head, -1, D)
    v = v.reshape(B, num_head, -1, D)
    scale = np.sqrt(D)
    energy = jnp.matmul(q, jnp.transpose(k, (0, 1, 3, 2))) / scale
    mask = attn_mask[:, None, :, :]
    energy = jnp.where(mask == 0, -jnp.inf, energy)
    attn = jax.nn.softmax(energy, axis=-1)
    o = jnp.matmul(attn, v)
    o = jnp.transpose(o, (0, 2, 1, 3)).reshape(B, -1, F)
    o = o @ params["wfc"].T
    o = o + res
    mean = jnp.mean(o, axis=-1, keepdims=True)
    var = jnp.mean((o - mean) ** 2, axis=-1, keepdims=True)
    return (o - mean) / jnp.sqrt(var + 1e-5) * params["gamma"] + params["beta"]


if __name__ == "__main__":
    B, S, F, H = 2, 8, 32, 4   # batch=2, seq=8, in_feature=32, num_head=4
    key = jax.random.PRNGKey(0)
    kx, kq, kk, kv, kf = jax.random.split(key, 5)

    x = jax.random.normal(kx, (B, S, F), dtype=jnp.float32)
    # Causal-style mask (every query row attends to at least one key).
    attn_mask = jnp.broadcast_to(
        jnp.tril(jnp.ones((S, S), dtype=jnp.float32)), (B, S, S))
    lengths = jnp.full((B,), S, dtype=jnp.int32)

    scale_w = 1.0 / np.sqrt(F)
    params = {
        "wq": jax.random.normal(kq, (F, F), dtype=jnp.float32) * scale_w,
        "wk": jax.random.normal(kk, (F, F), dtype=jnp.float32) * scale_w,
        "wv": jax.random.normal(kv, (F, F), dtype=jnp.float32) * scale_w,
        "wfc": jax.random.normal(kf, (F, F), dtype=jnp.float32) * scale_w,
        "gamma": jnp.ones((F,), dtype=jnp.float32),
        "beta": jnp.zeros((F,), dtype=jnp.float32),
    }

    out = attention_forward(params, x, attn_mask, lengths, num_head=H)
    out = jax.block_until_ready(out)

    ref = attention_ref(params, x, attn_mask, num_head=H)
    # bf16 MXU operands (f32 accumulation) -> loosened tolerance vs the f32 reference.
    np.testing.assert_allclose(np.asarray(out), np.asarray(ref),
                               rtol=5e-2, atol=5e-2)
    print("KERNEL_OK")
</pallas_src>

<mosaic_0001>
module attributes {stable_mosaic.version = 11 : i64} {
  func.func @qkv_kernel(%arg0: i32, %arg1: memref<16x32xbf16, #tpu.memory_space<vmem>>, %arg2: memref<32x96xbf16, #tpu.memory_space<vmem>>, %arg3: memref<16x96xbf16, #tpu.memory_space<vmem>>) attributes {dimension_semantics = [#tpu.dimension_semantics<parallel>], iteration_bounds = array<i64: 1>, scalar_prefetch = 0 : i64, scratch_operands = 0 : i64, tpu.core_type = #tpu.core_type<tc>, window_params = [{transform_indices = @transform_0, window_bounds = array<i64: 16, 32>}, {pipeline_mode = #tpu.pipeline_mode<synchronous>, transform_indices = @transform_1, window_bounds = array<i64: 32, 96>}, {transform_indices = @transform_2, window_bounds = array<i64: 16, 96>}]} {
    %c0 = arith.constant 0 : index
    %c0_0 = arith.constant 0 : index
    %0 = vector.load %arg1[%c0, %c0_0] : memref<16x32xbf16, #tpu.memory_space<vmem>>, vector<16x32xbf16>
    %c0_1 = arith.constant 0 : index
    %c0_2 = arith.constant 0 : index
    %1 = vector.load %arg2[%c0_1, %c0_2] : memref<32x96xbf16, #tpu.memory_space<vmem>>, vector<32x96xbf16>
    %cst = arith.constant dense<0.000000e+00> : vector<16x96xf32>
    %2 = tpu.matmul %0, %1, %cst {dimension_numbers = #tpu.dot_dimension_numbers<[1], [0], [0], [1], [0, 0, 1, 1], [], []>} : vector<16x32xbf16>, vector<32x96xbf16>, vector<16x96xf32> -> vector<16x96xf32>
    %3 = arith.truncf %2 : vector<16x96xf32> to vector<16x96xbf16>
    %c0_3 = arith.constant 0 : index
    %c0_4 = arith.constant 0 : index
    %4 = vector.load %arg3[%c0_3, %c0_4] : memref<16x96xbf16, #tpu.memory_space<vmem>>, vector<16x96xbf16>
    tpu.vector_store %arg3[%c0_3, %c0_4], %3 {strides = array<i32>} : memref<16x96xbf16, #tpu.memory_space<vmem>>, vector<16x96xbf16>,
    return
  }
  func.func @transform_0(%arg0: i32) -> (i32, i32) {
    %c0_i32 = arith.constant 0 : i32
    %c0_i32_0 = arith.constant 0 : i32
    return %arg0, %c0_i32 : i32, i32
  }
  func.func @transform_1(%arg0: i32) -> (i32, i32) {
    %c0_i32 = arith.constant 0 : i32
    %c0_i32_0 = arith.constant 0 : i32
    %c0_i32_1 = arith.constant 0 : i32
    return %c0_i32, %c0_i32_0 : i32, i32
  }
  func.func @transform_2(%arg0: i32) -> (i32, i32) {
    %c0_i32 = arith.constant 0 : i32
    %c0_i32_0 = arith.constant 0 : i32
    return %arg0, %c0_i32 : i32, i32
  }
}

</mosaic_0001>

<llo_original>
// kernel: tpu_custom_call.1
$region0: #{tpu_custom_call.1}
  #allocation0 [shape = 'u32[]', space=smem, size = 0x4, offset = 0x4, fixed_abs, tag = 'smem constant byte address 0x4 - core index']
  #allocation1 [shape = 'u32[144,128]{1,0:T(1,128)}', space=vmem, size = 0x12000, scoped, tag = 'internal scratch']
  %s0 = inlined_call_operand.hbm [shape: bf16[16,32], index: 0, kind: input, shape index: {}]
  %s1 = inlined_call_operand.hbm [shape: bf16[32,96], index: 1, kind: input, shape index: {}]
  %s2 = inlined_call_operand.hbm [shape: bf16[16,96], index: 2, kind: output, shape index: {}]
  %s3 = sld [smem:[#allocation0]]
  $region26: #{tpu_custom_call.1} parent=0
    _
  %s5 = ssub.s32 1, %s3
  %s6 = scalar_select 0, %s5, %s3
  $region1: #{tpu_custom_call.1} parent=0
    #allocation2 [shape = 'u8[4096]{0}', space=vmem, size = 0x1000, scoped, tag = 'input window, operand 0, single buffered']
    #allocation3 [shape = 's32[1]{0}', space=sflag, size = 0x4, scoped, tag = 'scoped memory for tpu_custom_call.1']
    #allocation4 [shape = 's32[1]{0}', space=sflag, size = 0x4, scoped, tag = 'scoped memory for tpu_custom_call.1']
    #allocation5 [shape = 'u8[8192]{0}', space=vmem, size = 0x2000, scoped, tag = 'input window, operand 1, single buffered']
    #allocation6 [shape = 's32[1]{0}', space=sflag, size = 0x4, scoped, tag = 'scoped memory for tpu_custom_call.1']
    #allocation7 [shape = 'u8[4096]{0}', space=vmem, size = 0x1000, scoped, tag = 'output window, operand 0, single buffered']
    %7 = vsyncpa [#allocation3], 0
    %8 = vsyncpa [#allocation6], 0
    %9 = vsyncpa [#allocation4], 0
    // Predicated region
    $region2: #{tpu_custom_call.1} parent=1 // pred_check
      _
    $region3: #{tpu_custom_call.1} parent=1 // pred_check_branch
      %11 = sbr.rel (0) target = $region5
    $region4: #{tpu_custom_call.1} parent=1 // pred_region
      %s13 = ssub.s32 128, 128
      %14 = vsyncadd [#allocation3], %s13
      %s15 = sshll.u32 [#allocation2], 4
      %s16 = int_to_ptr.vmem [resolvable:$true] %s15
      %21 = dma.hbm_to_vmem [thread:$0]  %s0, 128, %s16, [#allocation3], 64, 64, 4
    $region5: #{tpu_custom_call.1} parent=1 // pred_fallthru
      _
    // Predicated region
    $region6: #{tpu_custom_call.1} parent=1 // pred_check
      _
    $region7: #{tpu_custom_call.1} parent=1 // pred_check_branch
      %23 = sbr.rel (0) target = $region9
    $region8: #{tpu_custom_call.1} parent=1 // pred_region
      %s25 = ssub.s32 256, 256
      %26 = vsyncadd [#allocation6], %s25
      %s27 = sshll.u32 [#allocation5], 4
      %s28 = int_to_ptr.vmem [resolvable:$true] %s27
      %33 = dma.hbm_to_vmem [thread:$0]  %s1, 256, %s28, [#allocation6], 64, 64, 4
    $region9: #{tpu_custom_call.1} parent=1 // pred_fallthru
      _
    // Predicated region
    $region10: #{tpu_custom_call.1} parent=1 // pred_check
      _
    $region11: #{tpu_custom_call.1} parent=1 // pred_check_branch
      %35 = sbr.rel (0) target = $region13
    $region12: #{tpu_custom_call.1} parent=1 // pred_region
      %36 = dma.done [#allocation3], 128
    $region13: #{tpu_custom_call.1} parent=1 // pred_fallthru
      _
    // Predicated region
    $region14: #{tpu_custom_call.1} parent=1 // pred_check
      _
    $region15: #{tpu_custom_call.1} parent=1 // pred_check_branch
      %38 = sbr.rel (0) target = $region17
    $region16: #{tpu_custom_call.1} parent=1 // pred_region
      %39 = dma.done [#allocation6], 256
    $region17: #{tpu_custom_call.1} parent=1 // pred_fallthru
      _
    %v41 = vld [vmem:[#allocation2] sm:$0xf]
    %v42 = vld [vmem:[#allocation2 + $0x4] sm:$0xf]
    %v43 = vld [vmem:[#allocation5] sm:$0xf]
    %v44 = vld [vmem:[#allocation5 + $0x4] sm:$0xf]
    %v45 = vld [vmem:[#allocation5 + $0x8] sm:$0xf]
    %v46 = vld [vmem:[#allocation5 + $0xc] sm:$0xf]
    %v49 = vunpack.c.l.b16 %v41
    %v50 = vunpack.c.l.b16 %v42
    %v51 = vpack.c.b16 %v50, %v49
    %v56 = vunpack.c.l.b16 %v43
    %v57 = vunpack.c.l.b16 %v44
    %v58 = vunpack.c.l.b16 %v45
    %v59 = vunpack.c.l.b16 %v46
    %v60 = vpack.c.b16 %v57, %v56
    %v61 = vpack.c.b16 %v59, %v58
    %vm64 = vcmask 261120
    %v66 = vsel %vm64, %v51, 0
    %68 = vmatprep.subr.bf16.mxu0 0
    %69 = vmatpush1.bf16.msra.mxu0 0
    %70 = vmatprep.subr.bf16.mxu0 0
    %71 = vmatpush1.bf16.msra.mxu0 0
    %72 = vmatprep.subr.bf16.mxu0 0
    %73 = vmatpush1.bf16.msra.mxu0 0
    %74 = vmatprep.subr.bf16.mxu0 0
    %75 = vmatpush1.bf16.msra.mxu0 0
    %76 = vmatprep.subr.bf16.mxu0 0
    %77 = vmatpush1.bf16.msra.mxu0 0
    %78 = vmatprep.subr.bf16.mxu0 0
    %79 = vmatpush1.bf16.msra.mxu0 0
    %80 = vmatprep.subr.bf16.mxu0 0
    %81 = vmatpush1.bf16.msra.mxu0 %v61
    %82 = vmatprep.subr.bf16.mxu0 0
    %83 = vmatpush1.bf16.msra.mxu0 %v60
    %84 = vmatprep.subr.bf16.mxu0 0
    %85 = vmatpush2.bf16.msra.mxu0 0
    %86 = vmatprep.subr.bf16.mxu0 0
    %87 = vmatpush2.bf16.msra.mxu0 0
    %88 = vmatprep.subr.bf16.mxu0 0
    %89 = vmatpush2.bf16.msra.mxu0 0
    %90 = vmatprep.subr.bf16.mxu0 0
    %91 = vmatpush2.bf16.msra.mxu0 0
    %92 = vmatprep.subr.bf16.mxu0 0
    %93 = vmatpush2.bf16.msra.mxu0 0
    %94 = vmatprep.subr.bf16.mxu0 0
    %95 = vmatpush2.bf16.msra.mxu0 0
    %96 = vmatprep.subr.bf16.mxu0 0
    %97 = vmatpush2.bf16.msra.mxu0 0
    %98 = vmatprep.subr.bf16.mxu0 0
    %99 = vmatpush2.bf16.msra.mxu0 0
    %100 = vmatprep.mubr.bf16.mxu0 0
    %101 = vmatmul.mubr.bf16.gmra.mxu0 %v66
    %v102 = vpop.f32.mrf.mxu0
    %v103 = vadd.f32 0.0, %v102
    %v104 = vpop.f32.mrf.mxu0
    %v105 = vpop.f32.mrf.mxu0
    %v106 = vadd.f32 0.0, %v105
    %v107 = vpop.f32.mrf.mxu0
    %108 = vdwg.mxu0
    %v109 = vpack.c.bf16 %v106, %v103
    %v111 = vunpack.c.l.b16 %v109
    %v112 = vunpack.c.h.b16 %v109
    %v113 = vpack.c.b16 %v111, %v111
    %v114 = vpack.c.b16 %v112, %v112
    %vm117 = vcmask 781312
    %118 = vst.msk [vmem:[#allocation7] sm:$0xf] %vm117, %v113
    %119 = vst.msk [vmem:[#allocation7 + $0x4] sm:$0xf] %vm117, %v114
    // Predicated region
    $region18: #{tpu_custom_call.1} parent=1 // pred_check
      _
    $region19: #{tpu_custom_call.1} parent=1 // pred_check_branch
      %121 = sbr.rel (0) target = $region21
    $region20: #{tpu_custom_call.1} parent=1 // pred_region
      %s123 = ssub.s32 128, 128
      %124 = vsyncadd [#allocation4], %s123
      %s125 = sshll.u32 [#allocation7], 4
      %s126 = int_to_ptr.vmem [resolvable:$true] %s125
      %131 = dma.vmem_to_hbm [thread:$0]  %s126, 128, %s2, [#allocation4], 64, 64, 4
    $region21: #{tpu_custom_call.1} parent=1 // pred_fallthru
      _
    // Predicated region
    $region22: #{tpu_custom_call.1} parent=1 // pred_check
      _
    $region23: #{tpu_custom_call.1} parent=1 // pred_check_branch
      %133 = sbr.rel (0) target = $region25
    $region24: #{tpu_custom_call.1} parent=1 // pred_region
      %134 = dma.done [#allocation4], 128
    $region25: #{tpu_custom_call.1} parent=1 // pred_fallthru
      _
    %135 = vsyncpa [#allocation3], 1
    %136 = vsyncpa [#allocation6], 1
    %137 = vsyncpa [#allocation4], 1

</llo_original>
